<compile_context>
chip_gen: v5e
topology: v5e:2x2
jax: 0.10.0
libtpu: 0.0.40
codegen_flags: <defaults>
</compile_context>

<pallas_src>
import numpy as np

import jax
import jax.numpy as jnp
from jax.experimental import pallas as pl
from jax.experimental.pallas import tpu as pltpu


def _round_up(x, m):
    return (x + m - 1) // m * m


def _round_down(x, m):
    return x // m * m


def _vmem_info():
    """(physical_vmem_bytes, tile_budget_bytes, vmem_limit_bytes), conservative."""
    try:
        cap = int(getattr(pltpu.get_tpu_info(), "vmem_capacity_bytes"))
    except Exception:
        cap = 64 * 1024 * 1024  # assume the smallest (v7x) if query unavailable
    # ~40% of physical VMEM for our resident tiles; the rest is headroom for the
    # compiler's own scratch and pipeline bookkeeping. Cap the scoped limit well
    # under physical so this is legal on v7x (64 MiB) and generous on v5e/v6e.
    budget = min(int(cap * 0.4), 48 * 1024 * 1024)
    vmem_limit = min(int(cap * 0.75), 100 * 1024 * 1024)
    return cap, budget, vmem_limit


# ---------------------------------------------------------------------------
# Kernels
# ---------------------------------------------------------------------------

def _dann_kernel_single(x_ref, w_ref, b_ref, o_ref):
    """Whole problem resident in VMEM (no grid): out = relu(x @ W + b)."""
    y = jnp.dot(x_ref[...], w_ref[...].astype(jnp.float32),
                preferred_element_type=jnp.float32)
    y = y + b_ref[...]
    # Dropout(p=0.5) -> identity (eval mode).
    o_ref[...] = jnp.maximum(y, 0.0).astype(o_ref.dtype)


def _dann_kernel_tiled(x_ref, w_ref, b_ref, o_ref):
    """grid = (N tiles [parallel], K tiles [reduction, innermost]).

    x_ref: (B, tk)   activation K tile (f32)
    w_ref: (tk, tn)  weight tile (f32 or bf16; upcast in VMEM after the DMA)
    b_ref: (1, tn)   bias tile (f32)
    o_ref: (B, tn)   f32 output block, resident across K (doubles as accumulator)
    """
    k = pl.program_id(1)

    @pl.when(k == 0)
    def _init():
        o_ref[...] = jnp.zeros_like(o_ref)

    o_ref[...] += jnp.dot(x_ref[...], w_ref[...].astype(jnp.float32),
                          preferred_element_type=jnp.float32)

    @pl.when(k == pl.num_programs(1) - 1)
    def _finalize():
        # Dropout(p=0.5) -> identity (eval mode); bias + ReLU folded here.
        o_ref[...] = jnp.maximum(o_ref[...] + b_ref[...], 0.0)


# ---------------------------------------------------------------------------
# One-time parameter preparation (pad / cast / tiling plan). NOT per-call.
# ---------------------------------------------------------------------------

def prepare_dann_params(w_t, b, *, weight_dtype=jnp.float32, batch_size_hint=8,
                        max_tile_k=None, force_tiled=False,
                        vmem_budget_bytes=None):
    """Pad W/bias to lane-dense shapes, cast to the streaming dtype, pick tiles.

    w_t: (K, N) = PyTorch `layer_input.weight` transposed.  b: (N,).
    Returns a params dict consumed by dann_backbone_forward().
    """
    K, N = w_t.shape
    _, auto_budget, vmem_limit = _vmem_info()
    budget = int(vmem_budget_bytes) if vmem_budget_bytes is not None else auto_budget

    w_np_dtype = np.dtype(weight_dtype)
    w_itemsize = w_np_dtype.itemsize
    is_f32_weight = (w_np_dtype == np.dtype(np.float32))

    # Lane-dense N padding (zero cols of W / zero bias do not change the result;
    # padded output columns are sliced off in the forward).
    Np = _round_up(N, 128)
    w = jnp.asarray(w_t, jnp.float32)
    bias = jnp.asarray(b, jnp.float32)
    if Np != N:
        w = jnp.pad(w, ((0, 0), (0, Np - N)))
        bias = jnp.pad(bias, (0, Np - N))
    bias2d = bias.reshape(1, Np)

    # Byte-based single-shot admission: all residents (x, W (+f32 upcast temp),
    # out, bias) must fit the per-chip tile budget.
    Bh = max(1, int(batch_size_hint))
    w_resident = K * Np * w_itemsize + (0 if is_f32_weight else K * Np * 4)
    single_bytes = Bh * K * 4 + w_resident + Bh * Np * 4 + Np * 4

    if not force_tiled and single_bytes <= budget:
        return dict(mode="single", w=w.astype(weight_dtype), b=bias2d,
                    K=K, N=N, Np=Np, vmem_limit_bytes=vmem_limit)

    # --- K-tiled (+ parallel N) plan -------------------------------------
    # N tile: largest of {512, 256, 128} dividing Np (Np is a multiple of 128).
    tn = 512 if Np % 512 == 0 else (256 if Np % 256 == 0 else 128)

    # K tile from the VMEM byte budget: per K-row bytes = double-buffered weight
    # tile + (f32 upcast temp if bf16/int weights) + double-buffered x tile;
    # fixed residents = f32 output block + bias tile.
    fixed = Bh * tn * 4 + tn * 4
    per_k = 2 * tn * w_itemsize + 2 * Bh * 4
    if not is_f32_weight:
        per_k += tn * 4
    tk = _round_down(max(budget - fixed, 128 * per_k) // per_k, 128)
    tk = max(128, min(tk, _round_up(K, 128)))
    if max_tile_k is not None:
        tk = max(128, min(tk, _round_down(int(max_tile_k), 128)))

    # Pad W's K up to a multiple of tk once, here (zero rows -> no effect).
    Kp = _round_up(K, tk)
    if Kp != K:
        w = jnp.pad(w, ((0, Kp - K), (0, 0)))

    return dict(mode="tiled", w=w.astype(weight_dtype), b=bias2d,
                K=K, N=N, Np=Np, Kp=Kp, tk=tk, tn=tn,
                vmem_limit_bytes=vmem_limit)


# ---------------------------------------------------------------------------
# Forward
# ---------------------------------------------------------------------------

def dann_backbone_forward(x_nchw, params):
    """relu(dropout(flatten(x) @ W^T + b)); dropout is identity (eval mode)."""
    B = x_nchw.shape[0]
    x = x_nchw.reshape(B, -1).astype(jnp.float32)
    K, N, Np = params["K"], params["N"], params["Np"]
    assert x.shape[1] == K, f"flattened input size {x.shape[1]} != n_input {K}"
    w, bias = params["w"], params["b"]

    if params["mode"] == "single":
        # Everything VMEM-resident, one un-gridded call; ragged K is fine for
        # full-array blocks (no per-call K padding of x or W).
        vmem = pl.BlockSpec(memory_space=pltpu.MemorySpace.VMEM)
        out = pl.pallas_call(
            _dann_kernel_single,
            out_shape=jax.ShapeDtypeStruct((B, Np), jnp.float32),
            in_specs=[vmem, vmem, vmem],
            out_specs=vmem,
            compiler_params=pltpu.CompilerParams(
                vmem_limit_bytes=params["vmem_limit_bytes"]),
        )(x, w, bias)
    else:
        tk, tn, Kp = params["tk"], params["tn"], params["Kp"]
        if Kp != K:
            # Only the tiny (B, K) activation is padded per call; W was padded
            # once at parameter-setup time.
            x = jnp.pad(x, ((0, 0), (0, Kp - K)))
        w_itemsize = np.dtype(w.dtype).itemsize
        cost = pl.CostEstimate(
            flops=2 * B * Kp * Np,
            transcendentals=0,
            bytes_accessed=Kp * Np * w_itemsize + B * Kp * 4 + B * Np * 4 + Np * 4,
        )
        out = pl.pallas_call(
            _dann_kernel_tiled,
            out_shape=jax.ShapeDtypeStruct((B, Np), jnp.float32),
            grid_spec=pltpu.PrefetchScalarGridSpec(
                num_scalar_prefetch=0,
                grid=(Np // tn, Kp // tk),             # N outer (parallel), K inner
                in_specs=[
                    pl.BlockSpec((B, tk), lambda n, k: (0, k)),    # activations
                    pl.BlockSpec((tk, tn), lambda n, k: (k, n)),   # weight tile
                    pl.BlockSpec((1, tn), lambda n, k: (0, n)),    # bias tile
                ],
                out_specs=pl.BlockSpec((B, tn), lambda n, k: (0, n)),
            ),
            compiler_params=pltpu.CompilerParams(
                dimension_semantics=("parallel", "arbitrary"),
                vmem_limit_bytes=params["vmem_limit_bytes"],
            ),
            cost_estimate=cost,
        )(x, w, bias)

    return out[:, :N]


if __name__ == "__main__":
    # Small shapes consistent with the module: NCHW image input, flattened.
    B, C, H, W = 2, 3, 16, 16
    n_input = C * H * W      # 768
    n_hidden = 32

    key = jax.random.PRNGKey(0)
    kx, kw, kb = jax.random.split(key, 3)

    x = jax.random.normal(kx, (B, C, H, W), dtype=jnp.float32)

    # Deterministic PyTorch-style Linear init: U(-1/sqrt(fan_in), 1/sqrt(fan_in)).
    bound = 1.0 / jnp.sqrt(jnp.float32(n_input))
    # PyTorch stores weight as (n_hidden, n_input); we keep its transpose (K, N).
    w_t = jax.random.uniform(kw, (n_input, n_hidden), jnp.float32, -bound, bound)
    b = jax.random.uniform(kb, (n_hidden,), jnp.float32, -bound, bound)

    # Reference (plain JAX).
    ref = jnp.maximum(x.reshape(B, -1) @ w_t + b, 0.0)

    # 1) Default: byte-based admission puts this small problem on the
    #    single-shot VMEM-resident path. Params are prepared ONCE and reused.
    params = prepare_dann_params(w_t, b)
    assert params["mode"] == "single"
    out = jax.block_until_ready(dann_backbone_forward(x, params))
    assert out.shape == (B, n_hidden)
    assert jnp.allclose(out, ref, atol=1e-5, rtol=1e-5)

    # 2) Force the production path (K-reduction grid with a parallel N axis)
    #    with a small K tile so the grid has several reduction steps. f32 math.
    params_tiled = prepare_dann_params(w_t, b, force_tiled=True, max_tile_k=256)
    assert params_tiled["mode"] == "tiled"
    out_tiled = jax.block_until_ready(dann_backbone_forward(x, params_tiled))
    assert jnp.allclose(out_tiled, ref, atol=1e-5, rtol=1e-5)

    # 3) bf16 weight streaming (activations stay f32; weight tiles upcast
    #    in-kernel after the DMA): looser tolerance for weight quantization.
    params_bf16 = prepare_dann_params(w_t, b, weight_dtype=jnp.bfloat16,
                                      force_tiled=True, max_tile_k=256)
    out_bf16 = jax.block_until_ready(dann_backbone_forward(x, params_bf16))
    assert jnp.allclose(out_bf16, ref, atol=2e-2, rtol=2e-2)

    print("KERNEL_OK")
</pallas_src>

<mosaic_0001>
module attributes {stable_mosaic.version = 11 : i64} {
  func.func @_dann_kernel_single(%arg0: memref<2x768xf32, #tpu.memory_space<vmem>>, %arg1: memref<768x128xf32, #tpu.memory_space<vmem>>, %arg2: memref<1x128xf32, #tpu.memory_space<vmem>>, %arg3: memref<2x128xf32, #tpu.memory_space<vmem>>) attributes {dimension_semantics = [], scalar_prefetch = 0 : i64, scratch_operands = 0 : i64, tpu.core_type = #tpu.core_type<tc>} {
    %c0 = arith.constant 0 : index
    %c0_0 = arith.constant 0 : index
    %0 = vector.load %arg0[%c0, %c0_0] : memref<2x768xf32, #tpu.memory_space<vmem>>, vector<2x768xf32>
    %c0_1 = arith.constant 0 : index
    %c0_2 = arith.constant 0 : index
    %1 = vector.load %arg1[%c0_1, %c0_2] : memref<768x128xf32, #tpu.memory_space<vmem>>, vector<768x128xf32>
    %cst = arith.constant dense<0.000000e+00> : vector<2x128xf32>
    %2 = tpu.matmul %0, %1, %cst {dimension_numbers = #tpu.dot_dimension_numbers<[1], [0], [0], [1], [0, 0, 1, 1], [], []>} : vector<2x768xf32>, vector<768x128xf32>, vector<2x128xf32> -> vector<2x128xf32>
    %c0_3 = arith.constant 0 : index
    %c0_4 = arith.constant 0 : index
    %3 = vector.load %arg2[%c0_3, %c0_4] : memref<1x128xf32, #tpu.memory_space<vmem>>, vector<1x128xf32>
    %4 = vector.broadcast %3 : vector<1x128xf32> to vector<2x128xf32>
    %5 = arith.addf %2, %4 : vector<2x128xf32>
    %cst_5 = arith.constant 0.000000e+00 : f32
    %6 = vector.broadcast %cst_5 : f32 to vector<2x128xf32>
    %7 = arith.maximumf %5, %6 : vector<2x128xf32>
    %c0_6 = arith.constant 0 : index
    %c0_7 = arith.constant 0 : index
    %8 = vector.load %arg3[%c0_6, %c0_7] : memref<2x128xf32, #tpu.memory_space<vmem>>, vector<2x128xf32>
    tpu.vector_store %arg3[%c0_6, %c0_7], %7 {strides = array<i32>} : memref<2x128xf32, #tpu.memory_space<vmem>>, vector<2x128xf32>,
    return
  }
}

</mosaic_0001>

<llo_original>
// kernel: tpu_custom_call.1
$region0: #{tpu_custom_call.1}
  #allocation0 [shape = 'u32[]', space=smem, size = 0x4, offset = 0x4, fixed_abs, tag = 'smem constant byte address 0x4 - core index']
  #allocation1 [shape = 'u32[72,128]{1,0:T(1,128)}', space=vmem, size = 0x9000, scoped, tag = 'internal scratch']
  %s0 = inlined_call_operand.hbm [shape: f32[2,768], index: 0, kind: input, shape index: {}]
  %s1 = inlined_call_operand.hbm [shape: f32[768,128], index: 1, kind: input, shape index: {}]
  %s2 = inlined_call_operand.vmem [shape: f32[1,128], index: 2, kind: input, shape index: {}]
  %s3 = inlined_call_operand.hbm [shape: f32[2,128], index: 3, kind: output, shape index: {}]
  %s4 = sld [smem:[#allocation0]]
  $region30: #{tpu_custom_call.1} parent=0
    _
  %s6 = ssub.s32 1, %s4
  %s7 = scalar_select 0, %s6, %s4
  $region1: #{tpu_custom_call.1} parent=0
    #allocation2 [shape = 'u8[6144]{0}', space=vmem, size = 0x1800, scoped, tag = 'input window, operand 0, single buffered']
    #allocation3 [shape = 's32[1]{0}', space=sflag, size = 0x4, scoped, tag = 'scoped memory for tpu_custom_call.1']
    #allocation4 [shape = 's32[1]{0}', space=sflag, size = 0x4, scoped, tag = 'scoped memory for tpu_custom_call.1']
    #allocation5 [shape = 'u8[393216]{0}', space=vmem, size = 0x60000, scoped, tag = 'input window, operand 1, single buffered']
    #allocation6 [shape = 's32[1]{0}', space=sflag, size = 0x4, scoped, tag = 'scoped memory for tpu_custom_call.1']
    #allocation7 [shape = 'u8[1024]{0}', space=vmem, size = 0x400, scoped, tag = 'output window, operand 0, single buffered']
    %8 = vsyncpa [#allocation3], 0
    %9 = vsyncpa [#allocation6], 0
    %10 = vsyncpa [#allocation4], 0
    // Predicated region
    $region2: #{tpu_custom_call.1} parent=1 // pred_check
      _
    $region3: #{tpu_custom_call.1} parent=1 // pred_check_branch
      %12 = sbr.rel (0) target = $region5
    $region4: #{tpu_custom_call.1} parent=1 // pred_region
      %14 = vsyncadd [#allocation3], 0
      %s16 = sshll.u32 %s0, 4
      %s17 = int_to_ptr.hbm [resolvable:$true] %s16
      %s18 = sshll.u32 [#allocation2], 4
      %s19 = int_to_ptr.vmem [resolvable:$true] %s18
      %21 = dma.hbm_to_vmem [thread:$0]  %s17, 192, %s19, [#allocation3]
    $region5: #{tpu_custom_call.1} parent=1 // pred_fallthru
      _
    // Predicated region
    $region6: #{tpu_custom_call.1} parent=1 // pred_check
      _
    $region7: #{tpu_custom_call.1} parent=1 // pred_check_branch
      %23 = sbr.rel (0) target = $region9
    $region8: #{tpu_custom_call.1} parent=1 // pred_region
      %25 = vsyncadd [#allocation6], 0
      %s26 = sshll.u32 %s1, 4
      %s27 = int_to_ptr.hbm [resolvable:$true] %s26
      %s28 = sshll.u32 [#allocation5], 4
      %s29 = int_to_ptr.vmem [resolvable:$true] %s28
      %34 = dma.hbm_to_vmem [thread:$0]  %s27, 12288, %s29, [#allocation6], 128, 128, 8
    $region9: #{tpu_custom_call.1} parent=1 // pred_fallthru
      _
    // Predicated region
    $region10: #{tpu_custom_call.1} parent=1 // pred_check
      _
    $region11: #{tpu_custom_call.1} parent=1 // pred_check_branch
      %36 = sbr.rel (0) target = $region13
    $region12: #{tpu_custom_call.1} parent=1 // pred_region
      _
    $region13: #{tpu_custom_call.1} parent=1 // pred_fallthru
      _
    // Predicated region
    $region14: #{tpu_custom_call.1} parent=1 // pred_check
      _
    $region15: #{tpu_custom_call.1} parent=1 // pred_check_branch
      %38 = sbr.rel (0) target = $region17
    $region16: #{tpu_custom_call.1} parent=1 // pred_region
      %40 = dma.done [#allocation3], 192
    $region17: #{tpu_custom_call.1} parent=1 // pred_fallthru
      _
    // Predicated region
    $region18: #{tpu_custom_call.1} parent=1 // pred_check
      _
    $region19: #{tpu_custom_call.1} parent=1 // pred_check_branch
      %42 = sbr.rel (0) target = $region21
    $region20: #{tpu_custom_call.1} parent=1 // pred_region
      %44 = dma.done [#allocation6], 12288
    $region21: #{tpu_custom_call.1} parent=1 // pred_fallthru
      _
    %v45 = vld [vmem:[#allocation2] sm:$0xff]
    %v46 = vld [vmem:[#allocation2 + $0x8] sm:$0xf]
    %v47 = vld [vmem:[#allocation5] sm:$0xff]
    %v48 = vld [vmem:[#allocation5 + $0x8] sm:$0xff]
    %v49 = vld [vmem:[#allocation5 + $0x10] sm:$0xff]
    %v50 = vld [vmem:[#allocation5 + $0x18] sm:$0xff]
    %v51 = vld [vmem:[#allocation5 + $0x20] sm:$0xff]
    %v52 = vld [vmem:[#allocation5 + $0x28] sm:$0xff]
    %v53 = vld [vmem:[#allocation5 + $0x30] sm:$0xff]
    %v54 = vld [vmem:[#allocation5 + $0x38] sm:$0xff]
    %v55 = vld [vmem:[#allocation5 + $0x40] sm:$0xff]
    %v56 = vld [vmem:[#allocation5 + $0x48] sm:$0xff]
    %v57 = vld [vmem:[#allocation5 + $0x50] sm:$0xff]
    %v58 = vld [vmem:[#allocation5 + $0x58] sm:$0xff]
    %v59 = vld [vmem:[#allocation5 + $0x60] sm:$0xff]
    %v60 = vld [vmem:[#allocation5 + $0x68] sm:$0xff]
    %v61 = vld [vmem:[#allocation5 + $0x70] sm:$0xff]
    %v62 = vld [vmem:[#allocation5 + $0x78] sm:$0xff]
    %v63 = vld [vmem:[#allocation5 + $0x80] sm:$0xff]
    %v64 = vld [vmem:[#allocation5 + $0x88] sm:$0xff]
    %v65 = vld [vmem:[#allocation5 + $0x90] sm:$0xff]
    %v66 = vld [vmem:[#allocation5 + $0x98] sm:$0xff]
    %v67 = vld [vmem:[#allocation5 + $0xa0] sm:$0xff]
    %v68 = vld [vmem:[#allocation5 + $0xa8] sm:$0xff]
    %v69 = vld [vmem:[#allocation5 + $0xb0] sm:$0xff]
    %v70 = vld [vmem:[#allocation5 + $0xb8] sm:$0xff]
    %v71 = vld [vmem:[#allocation5 + $0xc0] sm:$0xff]
    %v72 = vld [vmem:[#allocation5 + $0xc8] sm:$0xff]
    %v73 = vld [vmem:[#allocation5 + $0xd0] sm:$0xff]
    %v74 = vld [vmem:[#allocation5 + $0xd8] sm:$0xff]
    %v75 = vld [vmem:[#allocation5 + $0xe0] sm:$0xff]
    %v76 = vld [vmem:[#allocation5 + $0xe8] sm:$0xff]
    %v77 = vld [vmem:[#allocation5 + $0xf0] sm:$0xff]
    %v78 = vld [vmem:[#allocation5 + $0xf8] sm:$0xff]
    %v79 = vld [vmem:[#allocation5 + $0x100] sm:$0xff]
    %v80 = vld [vmem:[#allocation5 + $0x108] sm:$0xff]
    %v81 = vld [vmem:[#allocation5 + $0x110] sm:$0xff]
    %v82 = vld [vmem:[#allocation5 + $0x118] sm:$0xff]
    %v83 = vld [vmem:[#allocation5 + $0x120] sm:$0xff]
    %v84 = vld [vmem:[#allocation5 + $0x128] sm:$0xff]
    %v85 = vld [vmem:[#allocation5 + $0x130] sm:$0xff]
    %v86 = vld [vmem:[#allocation5 + $0x138] sm:$0xff]
    %v87 = vld [vmem:[#allocation5 + $0x140] sm:$0xff]
    %v88 = vld [vmem:[#allocation5 + $0x148] sm:$0xff]
    %v89 = vld [vmem:[#allocation5 + $0x150] sm:$0xff]
    %v90 = vld [vmem:[#allocation5 + $0x158] sm:$0xff]
    %v91 = vld [vmem:[#allocation5 + $0x160] sm:$0xff]
    %v92 = vld [vmem:[#allocation5 + $0x168] sm:$0xff]
    %v93 = vld [vmem:[#allocation5 + $0x170] sm:$0xff]
    %v94 = vld [vmem:[#allocation5 + $0x178] sm:$0xff]
    %v95 = vld [vmem:[#allocation5 + $0x180] sm:$0xff]
    %v96 = vld [vmem:[#allocation5 + $0x188] sm:$0xff]
    %v97 = vld [vmem:[#allocation5 + $0x190] sm:$0xff]
    %v98 = vld [vmem:[#allocation5 + $0x198] sm:$0xff]
    %v99 = vld [vmem:[#allocation5 + $0x1a0] sm:$0xff]
    %v100 = vld [vmem:[#allocation5 + $0x1a8] sm:$0xff]
    %v101 = vld [vmem:[#allocation5 + $0x1b0] sm:$0xff]
    %v102 = vld [vmem:[#allocation5 + $0x1b8] sm:$0xff]
    %v103 = vld [vmem:[#allocation5 + $0x1c0] sm:$0xff]
    %v104 = vld [vmem:[#allocation5 + $0x1c8] sm:$0xff]
    %v105 = vld [vmem:[#allocation5 + $0x1d0] sm:$0xff]
    %v106 = vld [vmem:[#allocation5 + $0x1d8] sm:$0xff]
    %v107 = vld [vmem:[#allocation5 + $0x1e0] sm:$0xff]
    %v108 = vld [vmem:[#allocation5 + $0x1e8] sm:$0xff]
    %v109 = vld [vmem:[#allocation5 + $0x1f0] sm:$0xff]
    %v110 = vld [vmem:[#allocation5 + $0x1f8] sm:$0xff]
    %v111 = vld [vmem:[#allocation5 + $0x200] sm:$0xff]
    %v112 = vld [vmem:[#allocation5 + $0x208] sm:$0xff]
    %v113 = vld [vmem:[#allocation5 + $0x210] sm:$0xff]
    %v114 = vld [vmem:[#allocation5 + $0x218] sm:$0xff]
    %v115 = vld [vmem:[#allocation5 + $0x220] sm:$0xff]
    %v116 = vld [vmem:[#allocation5 + $0x228] sm:$0xff]
    %v117 = vld [vmem:[#allocation5 + $0x230] sm:$0xff]
    %v118 = vld [vmem:[#allocation5 + $0x238] sm:$0xff]
    %v119 = vld [vmem:[#allocation5 + $0x240] sm:$0xff]
    %v120 = vld [vmem:[#allocation5 + $0x248] sm:$0xff]
    %v121 = vld [vmem:[#allocation5 + $0x250] sm:$0xff]
    %v122 = vld [vmem:[#allocation5 + $0x258] sm:$0xff]
    %v123 = vld [vmem:[#allocation5 + $0x260] sm:$0xff]
    %v124 = vld [vmem:[#allocation5 + $0x268] sm:$0xff]
    %v125 = vld [vmem:[#allocation5 + $0x270] sm:$0xff]
    %v126 = vld [vmem:[#allocation5 + $0x278] sm:$0xff]
    %v127 = vld [vmem:[#allocation5 + $0x280] sm:$0xff]
    %v128 = vld [vmem:[#allocation5 + $0x288] sm:$0xff]
    %v129 = vld [vmem:[#allocation5 + $0x290] sm:$0xff]
    %v130 = vld [vmem:[#allocation5 + $0x298] sm:$0xff]
    %v131 = vld [vmem:[#allocation5 + $0x2a0] sm:$0xff]
    %v132 = vld [vmem:[#allocation5 + $0x2a8] sm:$0xff]
    %v133 = vld [vmem:[#allocation5 + $0x2b0] sm:$0xff]
    %v134 = vld [vmem:[#allocation5 + $0x2b8] sm:$0xff]
    %v135 = vld [vmem:[#allocation5 + $0x2c0] sm:$0xff]
    %v136 = vld [vmem:[#allocation5 + $0x2c8] sm:$0xff]
    %v137 = vld [vmem:[#allocation5 + $0x2d0] sm:$0xff]
    %v138 = vld [vmem:[#allocation5 + $0x2d8] sm:$0xff]
    %v139 = vld [vmem:[#allocation5 + $0x2e0] sm:$0xff]
    %v140 = vld [vmem:[#allocation5 + $0x2e8] sm:$0xff]
    %v141 = vld [vmem:[#allocation5 + $0x2f0] sm:$0xff]
    %v142 = vld [vmem:[#allocation5 + $0x2f8] sm:$0xff]
    %v143 = vld [vmem:[%s2] sm:$0x1]
    %v145 = vperm.slane %v143, 0
    %149 = vst [vmem:[#allocation1] ss:$4 sm:$0xff] %v45
    %s150 = scalar_lea.vmem [#allocation1], 32
    %151 = vst [vmem:[%s150] ss:$4 sm:$0xff] %v46
    %v152 = vld.sshfl [vmem:[#allocation1] sm:$0xff pattern:$0x73625140]
    %v153 = vld.sshfl [vmem:[#allocation1 + $0x8] sm:$0xff pattern:$0x73625140]
    %v154 = vld.sshfl [vmem:[#allocation1 + $0x10] sm:$0xff pattern:$0x73625140]
    %v155 = vld.sshfl [vmem:[#allocation1 + $0x18] sm:$0xff pattern:$0x73625140]
    %v156 = vld.sshfl [vmem:[#allocation1 + $0x20] sm:$0xff pattern:$0x73625140]
    %v157 = vld.sshfl [vmem:[#allocation1 + $0x28] sm:$0xff pattern:$0x73625140]
    %164 = vmatpush.msra.mxu0 %v62
    %165 = vmatpush.msra.mxu0 %v61
    %166 = vmatpush.msra.mxu0 %v60
    %167 = vmatpush.msra.mxu0 %v59
    %168 = vmatpush.msra.mxu0 %v58
    %169 = vmatpush.msra.mxu0 %v57
    %170 = vmatpush.msra.mxu0 %v56
    %171 = vmatpush.msra.mxu0 %v55
    %172 = vmatpush.msra.mxu0 %v54
    %173 = vmatpush.msra.mxu0 %v53
    %174 = vmatpush.msra.mxu0 %v52
    %175 = vmatpush.msra.mxu0 %v51
    %176 = vmatpush.msra.mxu0 %v50
    %177 = vmatpush.msra.mxu0 %v49
    %178 = vmatpush.msra.mxu0 %v48
    %179 = vmatpush.msra.mxu0 %v47
    %180 = vmatmul.f32.gmra.mxu0 %v152
    %v181 = vpop.f32.mrf.mxu0
    %v182 = vadd.f32 %v145, %v181
    %183 = vdwg.mxu0
    %184 = vmatpush.msra.mxu0 %v78
    %185 = vmatpush.msra.mxu0 %v77
    %186 = vmatpush.msra.mxu0 %v76
    %187 = vmatpush.msra.mxu0 %v75
    %188 = vmatpush.msra.mxu0 %v74
    %189 = vmatpush.msra.mxu0 %v73
    %190 = vmatpush.msra.mxu0 %v72
    %191 = vmatpush.msra.mxu0 %v71
    %192 = vmatpush.msra.mxu0 %v70
    %193 = vmatpush.msra.mxu0 %v69
    %194 = vmatpush.msra.mxu0 %v68
    %195 = vmatpush.msra.mxu0 %v67
    %196 = vmatpush.msra.mxu0 %v66
    %197 = vmatpush.msra.mxu0 %v65
    %198 = vmatpush.msra.mxu0 %v64
    %199 = vmatpush.msra.mxu0 %v63
    %200 = vmatmul.f32.gmra.mxu0 %v153
    %v201 = vpop.f32.mrf.mxu0
    %v202 = vadd.f32 %v182, %v201
    %203 = vdwg.mxu0
    %204 = vmatpush.msra.mxu0 %v94
    %205 = vmatpush.msra.mxu0 %v93
    %206 = vmatpush.msra.mxu0 %v92
    %207 = vmatpush.msra.mxu0 %v91
    %208 = vmatpush.msra.mxu0 %v90
    %209 = vmatpush.msra.mxu0 %v89
    %210 = vmatpush.msra.mxu0 %v88
    %211 = vmatpush.msra.mxu0 %v87
    %212 = vmatpush.msra.mxu0 %v86
    %213 = vmatpush.msra.mxu0 %v85
    %214 = vmatpush.msra.mxu0 %v84
    %215 = vmatpush.msra.mxu0 %v83
    %216 = vmatpush.msra.mxu0 %v82
    %217 = vmatpush.msra.mxu0 %v81
    %218 = vmatpush.msra.mxu0 %v80
    %219 = vmatpush.msra.mxu0 %v79
    %220 = vmatmul.f32.gmra.mxu0 %v154
    %v221 = vpop.f32.mrf.mxu0
    %v222 = vadd.f32 %v202, %v221
    %223 = vdwg.mxu0
    %224 = vmatpush.msra.mxu0 %v110
    %225 = vmatpush.msra.mxu0 %v109
    %226 = vmatpush.msra.mxu0 %v108
    %227 = vmatpush.msra.mxu0 %v107
    %228 = vmatpush.msra.mxu0 %v106
    %229 = vmatpush.msra.mxu0 %v105
    %230 = vmatpush.msra.mxu0 %v104
    %231 = vmatpush.msra.mxu0 %v103
    %232 = vmatpush.msra.mxu0 %v102
    %233 = vmatpush.msra.mxu0 %v101
    %234 = vmatpush.msra.mxu0 %v100
    %235 = vmatpush.msra.mxu0 %v99
    %236 = vmatpush.msra.mxu0 %v98
    %237 = vmatpush.msra.mxu0 %v97
    %238 = vmatpush.msra.mxu0 %v96
    %239 = vmatpush.msra.mxu0 %v95
    %240 = vmatmul.f32.gmra.mxu0 %v155
    %v241 = vpop.f32.mrf.mxu0
    %v242 = vadd.f32 %v222, %v241
    %243 = vdwg.mxu0
    %244 = vmatpush.msra.mxu0 %v126
    %245 = vmatpush.msra.mxu0 %v125
    %246 = vmatpush.msra.mxu0 %v124
    %247 = vmatpush.msra.mxu0 %v123
    %248 = vmatpush.msra.mxu0 %v122
    %249 = vmatpush.msra.mxu0 %v121
    %250 = vmatpush.msra.mxu0 %v120
    %251 = vmatpush.msra.mxu0 %v119
    %252 = vmatpush.msra.mxu0 %v118
    %253 = vmatpush.msra.mxu0 %v117
    %254 = vmatpush.msra.mxu0 %v116
    %255 = vmatpush.msra.mxu0 %v115
    %256 = vmatpush.msra.mxu0 %v114
    %257 = vmatpush.msra.mxu0 %v113
    %258 = vmatpush.msra.mxu0 %v112
    %259 = vmatpush.msra.mxu0 %v111
    %260 = vmatmul.f32.gmra.mxu0 %v156
    %v261 = vpop.f32.mrf.mxu0
    %v262 = vadd.f32 %v242, %v261
    %263 = vdwg.mxu0
    %264 = vmatpush.msra.mxu0 %v142
    %265 = vmatpush.msra.mxu0 %v141
    %266 = vmatpush.msra.mxu0 %v140
    %267 = vmatpush.msra.mxu0 %v139
    %268 = vmatpush.msra.mxu0 %v138
    %269 = vmatpush.msra.mxu0 %v137
    %270 = vmatpush.msra.mxu0 %v136
    %271 = vmatpush.msra.mxu0 %v135
    %272 = vmatpush.msra.mxu0 %v134
    %273 = vmatpush.msra.mxu0 %v133
    %274 = vmatpush.msra.mxu0 %v132
    %275 = vmatpush.msra.mxu0 %v131
    %276 = vmatpush.msra.mxu0 %v130
    %277 = vmatpush.msra.mxu0 %v129
    %278 = vmatpush.msra.mxu0 %v128
    %279 = vmatpush.msra.mxu0 %v127
    %280 = vmatmul.f32.gmra.mxu0 %v157
    %v281 = vpop.f32.mrf.mxu0
    %v282 = vadd.f32 %v262, %v281
    %283 = vdwg.mxu0
    %v284 = vmax.f32 %v282, 0.0
    %285 = vst [vmem:[#allocation7] sm:$0x3] %v284
    // Predicated region
    $region22: #{tpu_custom_call.1} parent=1 // pred_check
      _
    $region23: #{tpu_custom_call.1} parent=1 // pred_check_branch
      %287 = sbr.rel (0) target = $region25
    $region24: #{tpu_custom_call.1} parent=1 // pred_region
      %289 = vsyncadd [#allocation4], 0
      %s291 = sshll.u32 [#allocation7], 4
      %s292 = int_to_ptr.vmem [resolvable:$true] %s291
      %s293 = sshll.u32 %s3, 4
      %s294 = int_to_ptr.hbm [resolvable:$true] %s293
      %296 = dma.vmem_to_hbm [thread:$0]  %s292, 32, %s294, [#allocation4]
    $region25: #{tpu_custom_call.1} parent=1 // pred_fallthru
      _
    // Predicated region
    $region26: #{tpu_custom_call.1} parent=1 // pred_check
      _
    $region27: #{tpu_custom_call.1} parent=1 // pred_check_branch
      %298 = sbr.rel (0) target = $region29
    $region28: #{tpu_custom_call.1} parent=1 // pred_region
      %300 = dma.done [#allocation4], 32
    $region29: #{tpu_custom_call.1} parent=1 // pred_fallthru
      _
    %301 = vsyncpa [#allocation3], 1
    %302 = vsyncpa [#allocation6], 1
    %303 = vsyncpa [#allocation4], 1

</llo_original>
